<compile_context>
chip_gen: v7x
topology: tpu7x:2x2x1
jax: 0.10.0
libtpu: 0.0.40
codegen_flags: <defaults>
</compile_context>

<pallas_src>
import functools

import jax
import jax.numpy as jnp
from jax.experimental import pallas as pl
from jax.experimental.pallas import tpu as pltpu


# ---------------------------------------------------------------------------
# Kernel
# ---------------------------------------------------------------------------
def sinusoidal_pos_emb_kernel(x_ref, tab_ref, out_ref):
    # x_ref:   (TR, 1)  or (TR, L) f32  timesteps (replicated per lane group
    #                                   when lane-packed)
    # tab_ref: (2, L)   f32            row 0: freqs (tiled), row 1: 1.0 on the
    #                                   cos lanes, 0.0 on the sin lanes
    # out_ref: (TR, L)
    freq = tab_ref[0:1, :]                  # (1, L)
    use_cos = tab_ref[1:2, :] > 0.5         # (1, L) bool, broadcast over rows
    emb = x_ref[...] * freq                 # (TR, L) via broadcast multiply
    # Exact reference math: sin(emb) on the first half, cos(emb) on the second.
    # Both branches are computed full-width (select is cheap VPU work); this
    # keeps ONE unmasked full-lane-width store and avoids the f32 phase-add
    # precision loss of the sin(a + pi/2) trick.
    out_ref[...] = jnp.where(use_cos, jnp.cos(emb), jnp.sin(emb)).astype(out_ref.dtype)


# ---------------------------------------------------------------------------
# Pure-JAX reference (also the optional tiny-size fallback)
# ---------------------------------------------------------------------------
def sinusoidal_pos_emb_ref(x, dim, theta=10000.0):
    half = dim // 2
    scale = jnp.log(jnp.asarray(theta, jnp.float32)) / (half - 1)
    freqs = jnp.exp(jnp.arange(half, dtype=jnp.float32) * -scale)
    emb = x.astype(jnp.float32)[:, None] * freqs[None, :]
    return jnp.concatenate([jnp.sin(emb), jnp.cos(emb)], axis=-1)


# ---------------------------------------------------------------------------
# Grid-invariant table: row 0 = [freqs, freqs] (tiled G times),
#                       row 1 = [0...0, 1...1] (tiled G times)  -> cos select
# ---------------------------------------------------------------------------
@functools.lru_cache(maxsize=64)
def _freq_select_table(dim: int, theta: float, groups: int):
    half = dim // 2
    # f32 log/exp to bit-match the PyTorch module / reference.
    scale = jnp.log(jnp.asarray(theta, jnp.float32)) / (half - 1)
    freqs = jnp.exp(jnp.arange(half, dtype=jnp.float32) * -scale)          # (half,)
    freq_row = jnp.concatenate([freqs, freqs])                              # (dim,)
    cos_row = jnp.concatenate([jnp.zeros((half,), jnp.float32),
                               jnp.ones((half,), jnp.float32)])             # (dim,)
    table = jnp.stack([freq_row, cos_row])                                  # (2, dim)
    if groups > 1:
        table = jnp.tile(table, (1, groups))                                # (2, G*dim)
    return table


# ---------------------------------------------------------------------------
# Tiling helpers
# ---------------------------------------------------------------------------
def _round_up(n: int, m: int) -> int:
    return ((n + m - 1) // m) * m


# Stay well under the smallest default scoped-VMEM limit (v5e: 16 MiB;
# v6e/v7x: 32 MiB) with double-buffered f32 input + output blocks.
_VMEM_BUDGET_BYTES = 12 * 1024 * 1024


def _choose_tile_rows(rows: int, lanes: int, tile_rows: int) -> int:
    # ~16 * lanes bytes per row: (input + output) x double-buffer x 4 bytes.
    cap = max(8, ((_VMEM_BUDGET_BYTES // (16 * lanes)) // 8) * 8)
    tr = min(max(int(tile_rows), 8), cap)
    if rows <= tr:
        if rows >= 16:
            # Guarantee >= 2 grid steps so the "parallel" axis gives v7x's
            # second TensorCore work.
            return _round_up(pl.cdiv(rows, 2), 8)
        return rows                      # single full-extent block (always legal)
    return max(8, (tr // 8) * 8)         # tiled: multiple of 8 sublanes


# ---------------------------------------------------------------------------
# Wrapper
# ---------------------------------------------------------------------------
def sinusoidal_pos_emb(x, dim, theta=10000.0, tile_rows=1024,
                       out_dtype=jnp.float32, jax_fallback_bytes=0):
    """x: (B,) or (B, 1) timesteps -> (B, dim) = concat(sin(x*f), cos(x*f))."""
    assert dim % 2 == 0, "SinusoidalPosEmb requires an even dim"
    assert dim >= 4, "dim must be >= 4 (half_dim - 1 > 0)"
    if x.ndim == 2 and x.shape[1] == 1:
        x = x[:, 0]
    B = x.shape[0]

    # Optional tiny-size fast path (standalone pallas_call is launch-overhead
    # bound below ~1 MiB of output; best option is fusing into the consumer).
    if B * dim * 4 < jax_fallback_bytes:
        return sinusoidal_pos_emb_ref(x, dim, theta).astype(out_dtype)

    # Lane packing: for small power-of-two dim, G timesteps share a 128-lane row
    # so the store (and all VPU work) is lane-dense.
    if dim < 128 and 128 % dim == 0:
        G = 128 // dim
    else:
        # TODO(synk): dims that are not a divisor/multiple of 128 still work but
        # leave the lane tail masked; lcm-based packing would make them dense.
        G = 1
    L = G * dim

    xf = x.astype(jnp.float32).reshape(B)
    if G > 1:
        R = pl.cdiv(B, G)
        Bp = R * G
        if Bp != B:
            xf = jnp.pad(xf, (0, Bp - B))
        # (R, 128): each timestep replicated across its dim-wide lane group.
        x_in = jnp.repeat(xf.reshape(R, G), dim, axis=1)
        x_block_cols = L
    else:
        R = B
        Bp = B
        x_in = xf.reshape(B, 1)
        x_block_cols = 1

    table = _freq_select_table(int(dim), float(theta), int(G))   # (2, L)

    TR = _choose_tile_rows(R, L, tile_rows)
    num_tiles = pl.cdiv(R, TR)           # ragged last block handled by Pallas

    out = pl.pallas_call(
        sinusoidal_pos_emb_kernel,
        out_shape=jax.ShapeDtypeStruct((R, L), out_dtype),
        grid=(num_tiles,),
        in_specs=[
            pl.BlockSpec((TR, x_block_cols), lambda i: (i, 0)),   # timesteps
            pl.BlockSpec((2, L), lambda i: (0, 0)),               # freq + cos mask
        ],
        out_specs=pl.BlockSpec((TR, L), lambda i: (i, 0)),
        compiler_params=pltpu.CompilerParams(
            dimension_semantics=("parallel",),
        ),
    )(x_in, table)

    if G > 1:
        out = out.reshape(Bp, dim)       # contiguous view, no copy
        if Bp != B:
            out = out[:B]
    return out


# ---------------------------------------------------------------------------
# Self-test
# ---------------------------------------------------------------------------
if __name__ == "__main__":
    key = jax.random.PRNGKey(0)
    k1, k2, k3 = jax.random.split(key, 3)

    # 1) Typical diffusion timestep embedding; lane-packed path (dim=32 -> G=4).
    B, dim = 8, 32
    x = jax.random.uniform(k1, (B,), dtype=jnp.float32) * 1000.0
    out = jax.block_until_ready(sinusoidal_pos_emb(x, dim))
    ref = sinusoidal_pos_emb_ref(x, dim)
    assert out.shape == (B, dim), out.shape
    assert jnp.allclose(out, ref, atol=1e-4, rtol=1e-4), "mismatch (packed path)"

    # 2) Packed + multi-tile + ragged last block (dim=64 -> G=2, 20 rows, TR=8).
    B2, dim2 = 40, 64
    x2 = jax.random.uniform(k2, (B2,), dtype=jnp.float32) * 1000.0
    out2 = jax.block_until_ready(sinusoidal_pos_emb(x2, dim2, tile_rows=8))
    ref2 = sinusoidal_pos_emb_ref(x2, dim2)
    assert out2.shape == (B2, dim2), out2.shape
    assert jnp.allclose(out2, ref2, atol=1e-4, rtol=1e-4), "mismatch (grid path)"

    # 3) Un-packed path (dim multiple of 128), non-multiple-of-8 batch,
    #    bf16 output store.
    B3, dim3 = 10, 256
    x3 = jax.random.uniform(k3, (B3,), dtype=jnp.float32) * 1000.0
    out3 = jax.block_until_ready(
        sinusoidal_pos_emb(x3, dim3, out_dtype=jnp.bfloat16))
    ref3 = sinusoidal_pos_emb_ref(x3, dim3)
    assert out3.shape == (B3, dim3), out3.shape
    assert jnp.allclose(out3.astype(jnp.float32), ref3, atol=2e-2, rtol=2e-2), \
        "mismatch (bf16 / unpacked path)"

    print("KERNEL_OK")
</pallas_src>

<mosaic_0001>
module attributes {stable_mosaic.version = 11 : i64} {
  func.func @sinusoidal_pos_emb_kernel(%arg0: i32, %arg1: memref<2x128xf32, #tpu.memory_space<vmem>>, %arg2: memref<2x128xf32, #tpu.memory_space<vmem>>, %arg3: memref<2x128xf32, #tpu.memory_space<vmem>>) attributes {dimension_semantics = [#tpu.dimension_semantics<parallel>], iteration_bounds = array<i64: 1>, scalar_prefetch = 0 : i64, scratch_operands = 0 : i64, tpu.core_type = #tpu.core_type<tc>, window_params = [{transform_indices = @transform_0, window_bounds = array<i64: 2, 128>}, {pipeline_mode = #tpu.pipeline_mode<synchronous>, transform_indices = @transform_1, window_bounds = array<i64: 2, 128>}, {transform_indices = @transform_2, window_bounds = array<i64: 2, 128>}]} {
    %c0 = arith.constant 0 : index
    %c0_0 = arith.constant 0 : index
    %0 = vector.load %arg2[%c0, %c0_0] : memref<2x128xf32, #tpu.memory_space<vmem>>, vector<1x128xf32>
    %c1 = arith.constant 1 : index
    %c0_1 = arith.constant 0 : index
    %1 = vector.load %arg2[%c1, %c0_1] : memref<2x128xf32, #tpu.memory_space<vmem>>, vector<1x128xf32>
    %cst = arith.constant 5.000000e-01 : f32
    %2 = vector.broadcast %cst : f32 to vector<1x128xf32>
    %3 = arith.cmpf ogt, %1, %2 : vector<1x128xf32>
    %c0_2 = arith.constant 0 : index
    %c0_3 = arith.constant 0 : index
    %4 = vector.load %arg1[%c0_2, %c0_3] : memref<2x128xf32, #tpu.memory_space<vmem>>, vector<2x128xf32>
    %5 = vector.broadcast %0 : vector<1x128xf32> to vector<2x128xf32>
    %6 = arith.mulf %4, %5 : vector<2x128xf32>
    %7 = math.cos %6 : vector<2x128xf32>
    %8 = math.sin %6 : vector<2x128xf32>
    %9 = vector.shape_cast %3 : vector<1x128xi1> to vector<1x128xi1>
    %10 = vector.broadcast %9 : vector<1x128xi1> to vector<2x128xi1>
    %11 = arith.select %10, %7, %8 : vector<2x128xi1>, vector<2x128xf32>
    %c0_4 = arith.constant 0 : index
    %c0_5 = arith.constant 0 : index
    %12 = vector.load %arg3[%c0_4, %c0_5] : memref<2x128xf32, #tpu.memory_space<vmem>>, vector<2x128xf32>
    tpu.vector_store %arg3[%c0_4, %c0_5], %11 {strides = array<i32>} : memref<2x128xf32, #tpu.memory_space<vmem>>, vector<2x128xf32>,
    return
  }
  func.func @transform_0(%arg0: i32) -> (i32, i32) {
    %c0_i32 = arith.constant 0 : i32
    %c0_i32_0 = arith.constant 0 : i32
    return %arg0, %c0_i32 : i32, i32
  }
  func.func @transform_1(%arg0: i32) -> (i32, i32) {
    %c0_i32 = arith.constant 0 : i32
    %c0_i32_0 = arith.constant 0 : i32
    %c0_i32_1 = arith.constant 0 : i32
    return %c0_i32, %c0_i32_0 : i32, i32
  }
  func.func @transform_2(%arg0: i32) -> (i32, i32) {
    %c0_i32 = arith.constant 0 : i32
    %c0_i32_0 = arith.constant 0 : i32
    return %arg0, %c0_i32 : i32, i32
  }
}

</mosaic_0001>

<llo_original>
// kernel: tpu_custom_call.1
$region0: #{tpu_custom_call.1}
  #allocation0 [shape = 'u32[]', space=smem, size = 0x4, offset = 0x4, fixed_abs, tag = 'smem constant byte address 0x4 - core index']
  #allocation1 [shape = 'u32[144,128]{1,0:T(1,128)}', space=vmem, size = 0x12000, scoped, tag = 'internal scratch']
  %s0 = inlined_call_operand.hbm [shape: f32[2,128], index: 0, kind: input, shape index: {}]
  %s1 = inlined_call_operand.vmem [shape: f32[2,128], index: 1, kind: input, shape index: {}]
  %s2 = inlined_call_operand.hbm [shape: f32[2,128], index: 2, kind: output, shape index: {}]
  %s3 = sld [smem:[#allocation0]]
  $region22: #{tpu_custom_call.1} parent=0
    _
  %s5 = ssub.s32 1, %s3
  %s6 = scalar_select 0, %s5, %s3
  $region1: #{tpu_custom_call.1} parent=0
    #allocation2 [shape = 'u8[1024]{0}', space=vmem, size = 0x400, scoped, tag = 'input window, operand 0, single buffered']
    #allocation3 [shape = 's32[1]{0}', space=sflag, size = 0x4, scoped, tag = 'scoped memory for tpu_custom_call.1']
    #allocation4 [shape = 's32[1]{0}', space=sflag, size = 0x4, scoped, tag = 'scoped memory for tpu_custom_call.1']
    #allocation5 [shape = 'u8[1024]{0}', space=vmem, size = 0x400, scoped, tag = 'output window, operand 0, single buffered']
    %7 = vsyncpa [#allocation3], 0
    %8 = vsyncpa [#allocation4], 0
    // Predicated region
    $region2: #{tpu_custom_call.1} parent=1 // pred_check
      _
    $region3: #{tpu_custom_call.1} parent=1 // pred_check_branch
      %10 = sbr.rel (0) target = $region5
    $region4: #{tpu_custom_call.1} parent=1 // pred_region
      %s12 = ssub.s32 32, 32
      %13 = vsyncadd [#allocation3], %s12
      %s15 = sshll.u32 [#allocation2], 4
      %s16 = int_to_ptr.vmem [resolvable:$true] %s15
      %18 = dma.hbm_to_vmem [thread:$0]  %s0, 32, %s16, [#allocation3]
    $region5: #{tpu_custom_call.1} parent=1 // pred_fallthru
      _
    // Predicated region
    $region6: #{tpu_custom_call.1} parent=1 // pred_check
      _
    $region7: #{tpu_custom_call.1} parent=1 // pred_check_branch
      %20 = sbr.rel (0) target = $region9
    $region8: #{tpu_custom_call.1} parent=1 // pred_region
      _
    $region9: #{tpu_custom_call.1} parent=1 // pred_fallthru
      _
    // Predicated region
    $region10: #{tpu_custom_call.1} parent=1 // pred_check
      _
    $region11: #{tpu_custom_call.1} parent=1 // pred_check_branch
      %22 = sbr.rel (0) target = $region13
    $region12: #{tpu_custom_call.1} parent=1 // pred_region
      %23 = dma.done [#allocation3], 32
    $region13: #{tpu_custom_call.1} parent=1 // pred_fallthru
      _
    %v24 = vld [vmem:[%s1] sm:$0x1]
    %v25 = vld [vmem:[%s1 + $0x1] sm:$0x1]
    %vm26 = vcmp.gt.f32.partialorder %v25, 0.5
    %v27 = vld [vmem:[#allocation2] sm:$0x3]
    %v28 = vlaneseq
    %v29 = vshrl.u32 %v28, 7
    %v30 = vsub.s32 0, %v29
    %v31 = vrot.slane %v24, %v30
    %v32 = vmul.f32 %v27, %v31
    %v33 = vand.u32 2147483647, %v32
    %vm34 = vcmp.le.f32.partialorder %v33, 0.7853982
    %vm35 = vcmp.lt.s32.totalorder %v32, 0
    %v36 = vand.u32 %v32, 2139095040
    %v37 = vshrl.u32 %v36, 23
    %v38 = vsub.s32 %v37, 127
    %v39 = vand.u32 2147483647, %v32
    %v40 = vand.u32 %v39, 8388607
    %v41 = vor.u32 %v40, 8388608
    %v42 = vsub.s32 0, %v41
    %v43 = vadd.s32 %v38, 1
    %vm44 = vcmp.gt.s32.totalorder %v43, 0
    %v45 = vsel %vm44, %v43, 0
    %v46 = vshrl.u32 %v45, 5
    %v47 = vand.u32 %v45, 31
    %v48 = vsub.s32 32, %v47
    %v49 = vshrl.u32 683565275, %v48
    %v50 = vshll.u32 683565275, %v47
    %v51 = vshrl.u32 2475754826, %v48
    %v52 = vor.u32 %v50, %v51
    %v53 = vshll.u32 2475754826, %v47
    %v54 = vshrl.u32 2131351028, %v48
    %v55 = vor.u32 %v53, %v54
    %v56 = vshll.u32 2131351028, %v47
    %v57 = vshrl.u32 2102212464, %v48
    %v58 = vor.u32 %v56, %v57
    %v59 = vshll.u32 2102212464, %v47
    %v60 = vshrl.u32 920167782, %v48
    %v61 = vor.u32 %v59, %v60
    %v62 = vshll.u32 920167782, %v47
    %v63 = vshrl.u32 1326507024, %v48
    %v64 = vor.u32 %v62, %v63
    %vm65 = vcmp.lt.s32.totalorder %v46, 1
    %vm66 = vcmp.lt.s32.totalorder %v46, 2
    %vm67 = vcmp.lt.s32.totalorder %v46, 3
    %vm68 = vcmp.lt.s32.totalorder %v46, 4
    %v69 = vsel %vm65, %v49, %v52
    %v70 = vsel %vm68, %v58, 2102212464
    %v71 = vsel %vm67, %v55, %v70
    %v72 = vsel %vm66, %v69, %v71
    %v73 = vsel %vm65, %v52, %v55
    %v74 = vsel %vm68, %v61, 920167782
    %v75 = vsel %vm67, %v58, %v74
    %v76 = vsel %vm66, %v73, %v75
    %v77 = vsel %vm65, %v55, %v58
    %v78 = vsel %vm68, %v64, 1326507024
    %v79 = vsel %vm67, %v61, %v78
    %v80 = vsel %vm66, %v77, %v79
    %v81 = vshll.u32 %v41, 8
    %v82 = vmul.u32.u64.compose %v81, %v80
    %v83 = vextract.low.u32 %v82
    %v84 = vextract.high.u32 %v82
    %v85 = vmul.u32.u64.compose %v81, %v76
    %v86 = vextract.low.u32 %v85
    %v87 = vextract.high.u32 %v85
    %v88 = vmul.u32 %v81, %v72
    %v89 = vadd.s32 %v84, %v86
    %vm90 = vc.u32 %v84, %v86
    %v91 = vadd.s32 %v87, 1
    %v92 = vsel %vm90, %v91, %v87
    %v93 = vadd.s32 %v88, %v92
    %v94 = vadd.s32 %v93, 536870912
    %v95 = vshrl.u32 %v94, 30
    %v96 = vshll.u32 %v95, 30
    %v97 = vsub.s32 %v93, %v96
    %vm98 = vcmp.lt.s32.totalorder %v97, 0
    %v99 = vsub.s32 0, %v97
    %v100 = vsel %vm98, %v99, %v97
    %v101 = vclz %v100
    %v102 = vsub.s32 %v101, 2
    %vm103 = vcmp.gt.s32.totalorder 0, %v102
    %v104 = vsel %vm103, 0, %v102
    %v105 = vsub.s32 32, %v104
    %v106 = vshll.u32 %v97, %v104
    %v107 = vshrl.u32 %v89, %v105
    %v108 = vor.u32 %v106, %v107
    %v109 = vsub.s32 4294967266, %v104
    %v110 = vadd.s32 %v109, 127
    %v111 = vshll.u32 %v110, 23
    %v112 = vor.u32 4788187, %v111
    %v113 = vand.u32 2147483647, %v112
    %v115 = vcvt.s32.f32 %v108
    %v116 = vmul.f32 %v115, %v113
    %v117 = vxor.u32 %v116, 2147483648
    %v118 = vsel %vm35, %v117, %v116
    %v119 = vsub.s32 4, %v95
    %v120 = vsel %vm35, %v119, %v95
    %v121 = vsel %vm34, %v32, %v118
    %v122 = vsel %vm34, 0, %v120
    %v123 = vcosq.f32.pop %v121
    %v124 = vsinq.f32.pop %v121
    %vm125 = vweird.f32 %v32
    %v126 = vand.u32 %v122, 3
    %vm127 = vcmp.lt.s32.totalorder %v126, 2
    %vm128 = vcmp.eq.s32.totalorder %v126, 0
    %v129 = vxor.u32 %v124, 2147483648
    %v130 = vsel %vm128, %v123, %v129
    %vm131 = vcmp.eq.s32.totalorder %v126, 2
    %v132 = vxor.u32 %v123, 2147483648
    %v133 = vsel %vm131, %v132, %v124
    %v134 = vsel %vm127, %v130, %v133
    %v135 = vsel %vm125, nan, %v134
    %v136 = vand.u32 2147483647, %v32
    %vm137 = vcmp.le.f32.partialorder %v136, 0.7853982
    %vm138 = vcmp.lt.s32.totalorder %v32, 0
    %v139 = vand.u32 %v32, 2139095040
    %v140 = vshrl.u32 %v139, 23
    %v141 = vsub.s32 %v140, 127
    %v142 = vand.u32 2147483647, %v32
    %v143 = vand.u32 %v142, 8388607
    %v144 = vor.u32 %v143, 8388608
    %v145 = vsub.s32 0, %v144
    %v146 = vadd.s32 %v141, 1
    %vm147 = vcmp.gt.s32.totalorder %v146, 0
    %v148 = vsel %vm147, %v146, 0
    %v149 = vshrl.u32 %v148, 5
    %v150 = vand.u32 %v148, 31
    %v151 = vsub.s32 32, %v150
    %v152 = vshrl.u32 683565275, %v151
    %v153 = vshll.u32 683565275, %v150
    %v154 = vshrl.u32 2475754826, %v151
    %v155 = vor.u32 %v153, %v154
    %v156 = vshll.u32 2475754826, %v150
    %v157 = vshrl.u32 2131351028, %v151
    %v158 = vor.u32 %v156, %v157
    %v159 = vshll.u32 2131351028, %v150
    %v160 = vshrl.u32 2102212464, %v151
    %v161 = vor.u32 %v159, %v160
    %v162 = vshll.u32 2102212464, %v150
    %v163 = vshrl.u32 920167782, %v151
    %v164 = vor.u32 %v162, %v163
    %v165 = vshll.u32 920167782, %v150
    %v166 = vshrl.u32 1326507024, %v151
    %v167 = vor.u32 %v165, %v166
    %vm168 = vcmp.lt.s32.totalorder %v149, 1
    %vm169 = vcmp.lt.s32.totalorder %v149, 2
    %vm170 = vcmp.lt.s32.totalorder %v149, 3
    %vm171 = vcmp.lt.s32.totalorder %v149, 4
    %v172 = vsel %vm168, %v152, %v155
    %v173 = vsel %vm171, %v161, 2102212464
    %v174 = vsel %vm170, %v158, %v173
    %v175 = vsel %vm169, %v172, %v174
    %v176 = vsel %vm168, %v155, %v158
    %v177 = vsel %vm171, %v164, 920167782
    %v178 = vsel %vm170, %v161, %v177
    %v179 = vsel %vm169, %v176, %v178
    %v180 = vsel %vm168, %v158, %v161
    %v181 = vsel %vm171, %v167, 1326507024
    %v182 = vsel %vm170, %v164, %v181
    %v183 = vsel %vm169, %v180, %v182
    %v184 = vshll.u32 %v144, 8
    %v185 = vmul.u32.u64.compose %v184, %v183
    %v186 = vextract.low.u32 %v185
    %v187 = vextract.high.u32 %v185
    %v188 = vmul.u32.u64.compose %v184, %v179
    %v189 = vextract.low.u32 %v188
    %v190 = vextract.high.u32 %v188
    %v191 = vmul.u32 %v184, %v175
    %v192 = vadd.s32 %v187, %v189
    %vm193 = vc.u32 %v187, %v189
    %v194 = vadd.s32 %v190, 1
    %v195 = vsel %vm193, %v194, %v190
    %v196 = vadd.s32 %v191, %v195
    %v197 = vadd.s32 %v196, 536870912
    %v198 = vshrl.u32 %v197, 30
    %v199 = vshll.u32 %v198, 30
    %v200 = vsub.s32 %v196, %v199
    %vm201 = vcmp.lt.s32.totalorder %v200, 0
    %v202 = vsub.s32 0, %v200
    %v203 = vsel %vm201, %v202, %v200
    %v204 = vclz %v203
    %v205 = vsub.s32 %v204, 2
    %vm206 = vcmp.gt.s32.totalorder 0, %v205
    %v207 = vsel %vm206, 0, %v205
    %v208 = vsub.s32 32, %v207
    %v209 = vshll.u32 %v200, %v207
    %v210 = vshrl.u32 %v192, %v208
    %v211 = vor.u32 %v209, %v210
    %v212 = vsub.s32 4294967266, %v207
    %v213 = vadd.s32 %v212, 127
    %v214 = vshll.u32 %v213, 23
    %v215 = vor.u32 4788187, %v214
    %v216 = vand.u32 2147483647, %v215
    %v218 = vcvt.s32.f32 %v211
    %v219 = vmul.f32 %v218, %v216
    %v220 = vxor.u32 %v219, 2147483648
    %v221 = vsel %vm138, %v220, %v219
    %v222 = vsub.s32 4, %v198
    %v223 = vsel %vm138, %v222, %v198
    %v224 = vsel %vm137, %v32, %v221
    %v225 = vsel %vm137, 0, %v223
    %v226 = vcosq.f32.pop %v224
    %v227 = vsinq.f32.pop %v224
    %vm228 = vweird.f32 %v32
    %v229 = vadd.s32 %v225, 3
    %v230 = vand.u32 %v229, 3
    %vm231 = vcmp.lt.s32.totalorder %v230, 2
    %vm232 = vcmp.eq.s32.totalorder %v230, 0
    %v233 = vxor.u32 %v227, 2147483648
    %v234 = vsel %vm232, %v226, %v233
    %vm235 = vcmp.eq.s32.totalorder %v230, 2
    %v236 = vxor.u32 %v226, 2147483648
    %v237 = vsel %vm235, %v236, %v227
    %v238 = vsel %vm231, %v234, %v237
    %v239 = vsel %vm228, nan, %v238
    %v240 = vsel %vm26, 1, 0
    %v241 = vlaneseq
    %v242 = vshrl.u32 %v241, 7
    %v243 = vsub.s32 0, %v242
    %v244 = vrot.slane %v240, %v243
    %vm245 = vcmp.eq.s32.totalorder %v244, 1
    %v246 = vsel %vm245, %v135, %v239
    %247 = vst [vmem:[#allocation5] sm:$0x3] %v246
    // Predicated region
    $region14: #{tpu_custom_call.1} parent=1 // pred_check
      _
    $region15: #{tpu_custom_call.1} parent=1 // pred_check_branch
      %249 = sbr.rel (0) target = $region17
    $region16: #{tpu_custom_call.1} parent=1 // pred_region
      %s251 = ssub.s32 32, 32
      %252 = vsyncadd [#allocation4], %s251
      %s254 = sshll.u32 [#allocation5], 4
      %s255 = int_to_ptr.vmem [resolvable:$true] %s254
      %257 = dma.vmem_to_hbm [thread:$0]  %s255, 32, %s2, [#allocation4]
    $region17: #{tpu_custom_call.1} parent=1 // pred_fallthru
      _
    // Predicated region
    $region18: #{tpu_custom_call.1} parent=1 // pred_check
      _
    $region19: #{tpu_custom_call.1} parent=1 // pred_check_branch
      %259 = sbr.rel (0) target = $region21
    $region20: #{tpu_custom_call.1} parent=1 // pred_region
      %260 = dma.done [#allocation4], 32
    $region21: #{tpu_custom_call.1} parent=1 // pred_fallthru
      _
    %261 = vsyncpa [#allocation3], 1
    %262 = vsyncpa [#allocation4], 1

</llo_original>
